<compile_context>
chip_gen: v7x
topology: tpu7x:2x2x1
jax: 0.10.0
libtpu: 0.0.40
codegen_flags: <defaults>
</compile_context>

<pallas_src>
import jax
import jax.numpy as jnp
from jax.experimental import pallas as pl
from jax.experimental.pallas import tpu as pltpu


def _round_up(v, m):
    return -(-v // m) * m


def _cdiv(a, b):
    return -(-a // b)


def _sublane_granule(dtype):
    # Sub-32-bit dtypes pack rows along sublanes: keep row tiles on the packing granule.
    return {4: 8, 2: 16, 1: 32}.get(jnp.dtype(dtype).itemsize, 8)


def _tpu_vmem_capacity_bytes():
    try:
        info = pltpu.get_tpu_info()
        cap = getattr(info, "vmem_capacity_bytes", None)
        if cap:
            return int(cap)
    except Exception:
        pass
    return 64 * 1024 * 1024  # conservative default (v7x per-TC VMEM)


def _tile_budgets():
    """(per-block tile byte budget, vmem_limit_bytes) tuned per TPU generation."""
    cap = _tpu_vmem_capacity_bytes()
    if cap >= 96 * 1024 * 1024:            # v5e / v6e: 128 MiB VMEM -> go bigger
        return 6 * 1024 * 1024, 56 * 1024 * 1024
    return 4 * 1024 * 1024, 32 * 1024 * 1024   # v7x: 64 MiB VMEM -> stay modest


def _choose_split(G, itemsize, granule, tile_budget):
    """Pick (R, L) with R * L == G.

    The per-(batch, half) slab is G *contiguous* elements, so viewing it as
    (R, L) for any divisor L of G is a free reshape (no pad, no copy).  Score
    each divisor by vreg density and pick the best:
        lane_util    = L / round_up(L, 128)
        sublane_util = R / round_up(R, granule)   (rewards R >= granule)
    Ties prefer larger L (longer contiguous DMA rows, fewer descriptors).
    """
    max_L = max(128, tile_budget // (granule * itemsize))
    best_key, best_R, best_L = None, 1, G
    i = 1
    while i * i <= G:
        if G % i == 0:
            for L in (i, G // i):
                if L > max_L:
                    continue
                R = G // L
                lane_u = L / _round_up(L, 128)
                sub_u = R / _round_up(R, granule)
                key = (lane_u * sub_u, min(L, 4096), L)
                if best_key is None or key > best_key:
                    best_key, best_R, best_L = key, R, L
        i += 1
    return best_R, best_L


def _cprelu_kernel(alphas_ref, x_ref, o_ref):
    # alphas_ref: SMEM (2,) float32 = [r_alpha, i_alpha] (scalar prefetch).
    # x_ref/o_ref: VMEM (1, TR, L) tile covering part of one (batch, half) slab;
    # program_id(0) % 2 tells which half this block belongs to (scalar path only).
    half = pl.program_id(0) % 2
    a = jnp.where(half == 0, alphas_ref[0], alphas_ref[1]).astype(x_ref.dtype)
    x = x_ref[...]
    o_ref[...] = jnp.where(x >= 0, x, a * x)


def cprelu(x, r_alpha, i_alpha, *, donate_input=False, tile_budget_bytes=None):
    """cPReLU forward. x: (N, C, H, W), complex_axis=1. Returns same shape/dtype.

    donate_input=True adds input_output_aliases so XLA may reuse x's HBM buffer
    (inference only — do not enable when x is needed as an autodiff residual).
    tile_budget_bytes overrides the per-tile byte budget (mainly for testing the
    multi-row-tile / ragged-edge path at small shapes).
    """
    N, C, H, W = x.shape
    assert C % 2 == 0, "channel axis must split into real/imag halves"
    Ch = C // 2
    G = Ch * H * W                          # elements per contiguous (batch, half) slab

    itemsize = jnp.dtype(x.dtype).itemsize
    granule = _sublane_granule(x.dtype)
    auto_budget, vmem_limit = _tile_budgets()
    tile_budget = tile_budget_bytes if tile_budget_bytes is not None else auto_budget

    # Free factorization of the contiguous slab: (R rows) x (L lanes), no padding.
    R, L = _choose_split(G, itemsize, granule, tile_budget)

    # Row-tile size: full extent if it fits, else balanced multiples of the dtype granule.
    row_bytes = L * itemsize
    if R <= granule or R * row_bytes <= tile_budget:
        TR = R                              # == full array dim, always legal
    else:
        target = max(granule, (tile_budget // row_bytes) // granule * granule)
        ntiles = _cdiv(R, target)
        TR = min(_round_up(_cdiv(R, ntiles), granule), R)
    num_row_tiles = _cdiv(R, TR)

    # Free reshapes only: (N, C, H, W) -> (2N, R, L); blocks are fully contiguous in HBM.
    x3 = x.reshape(2 * N, R, L)
    alphas = jnp.stack([r_alpha, i_alpha]).astype(jnp.float32)   # (2,) -> SMEM via prefetch

    grid_spec = pltpu.PrefetchScalarGridSpec(
        num_scalar_prefetch=1,
        grid=(2 * N, num_row_tiles),
        in_specs=[pl.BlockSpec((1, TR, L), lambda b, t, a_ref: (b, t, 0))],
        out_specs=pl.BlockSpec((1, TR, L), lambda b, t, a_ref: (b, t, 0)),
    )

    extra = {}
    if donate_input:
        # Inputs are (alphas, x3): alias x3 (input index 1) onto output 0.
        extra["input_output_aliases"] = {1: 0}

    out3 = pl.pallas_call(
        _cprelu_kernel,
        out_shape=jax.ShapeDtypeStruct((2 * N, R, L), x.dtype),
        grid_spec=grid_spec,
        compiler_params=pltpu.CompilerParams(
            dimension_semantics=("parallel", "parallel"),
            vmem_limit_bytes=vmem_limit,
        ),
        cost_estimate=pl.CostEstimate(
            flops=x.size,
            transcendentals=0,
            bytes_accessed=2 * x.size * itemsize,
        ),
        **extra,
    )(alphas, x3)

    return out3.reshape(N, C, H, W)


def cprelu_ref(x, r_alpha, i_alpha):
    """Pure-JAX reference mirroring the PyTorch module."""
    C = x.shape[1]
    real, imag = x[:, : C // 2], x[:, C // 2:]
    prelu = lambda v, a: jnp.where(v >= 0, v, a * v)
    return jnp.concatenate([prelu(real, r_alpha), prelu(imag, i_alpha)], axis=1)


if __name__ == "__main__":
    key = jax.random.PRNGKey(0)
    # Distinct slopes so the real/imag split is actually exercised (PyTorch default is 0.25).
    r_alpha = jnp.float32(0.25)
    i_alpha = jnp.float32(0.10)

    # 1) NCHW input; channel axis holds [real | imag] halves. Nicely 128-aligned slab.
    x = jax.random.normal(key, (2, 4, 16, 16), dtype=jnp.float32)
    out = jax.block_until_ready(cprelu(x, r_alpha, i_alpha))
    ref = cprelu_ref(x, r_alpha, i_alpha)
    assert out.shape == x.shape and out.dtype == x.dtype
    assert jnp.allclose(out, ref, atol=1e-6, rtol=1e-6)

    # 2) Ch*H*W not a multiple of 128 -> exercises the no-pad divisor split
    #    (lane dim equal to full extent, masked only in the final lane group).
    x2 = jax.random.normal(jax.random.PRNGKey(1), (1, 2, 300, 70), dtype=jnp.float32)
    out2 = jax.block_until_ready(cprelu(x2, r_alpha, i_alpha))
    assert jnp.allclose(out2, cprelu_ref(x2, r_alpha, i_alpha), atol=1e-6, rtol=1e-6)

    # 3) Tiny artificial tile budget -> exercises multi row-tile grid + ragged final row tile.
    x3 = jax.random.normal(jax.random.PRNGKey(2), (2, 6, 50, 9), dtype=jnp.float32)
    out3 = jax.block_until_ready(cprelu(x3, r_alpha, i_alpha, tile_budget_bytes=4096))
    assert jnp.allclose(out3, cprelu_ref(x3, r_alpha, i_alpha), atol=1e-6, rtol=1e-6)

    print("KERNEL_OK")
</pallas_src>

<mosaic_0001>
module attributes {stable_mosaic.version = 11 : i64} {
  func.func @_cprelu_kernel(%arg0: i32, %arg1: i32, %arg2: memref<2xf32, #tpu.memory_space<smem>>, %arg3: memref<1x4x128xf32, #tpu.memory_space<vmem>>, %arg4: memref<1x4x128xf32, #tpu.memory_space<vmem>>) attributes {dimension_semantics = [#tpu.dimension_semantics<parallel>, #tpu.dimension_semantics<parallel>], iteration_bounds = array<i64: 4, 1>, scalar_prefetch = 1 : i64, scratch_operands = 0 : i64, tpu.core_type = #tpu.core_type<tc>, window_params = [{transform_indices = @transform_0, window_bounds = array<i64: 1, 4, 128>}, {transform_indices = @transform_1, window_bounds = array<i64: 1, 4, 128>}]} {
    %c2_i32 = arith.constant 2 : i32
    %c0_i32 = arith.constant 0 : i32
    %0 = arith.cmpi eq, %c2_i32, %c0_i32 : i32
    %c1_i32 = arith.constant 1 : i32
    %1 = arith.select %0, %c1_i32, %c2_i32 : i32
    %2 = arith.remsi %arg0, %1 : i32
    %c0_i32_0 = arith.constant 0 : i32
    %3 = arith.cmpi ne, %2, %c0_i32_0 : i32
    %c0_i32_1 = arith.constant 0 : i32
    %4 = arith.cmpi slt, %2, %c0_i32_1 : i32
    %c0_i32_2 = arith.constant 0 : i32
    %5 = arith.cmpi slt, %1, %c0_i32_2 : i32
    %6 = arith.xori %4, %5 : i1
    %7 = arith.andi %6, %3 : i1
    %8 = arith.addi %2, %1 : i32
    %9 = arith.select %7, %8, %2 : i32
    %c0_i32_3 = arith.constant 0 : i32
    %10 = arith.cmpi eq, %9, %c0_i32_3 : i32
    %c0 = arith.constant 0 : index
    %11 = memref.load %arg2[%c0] : memref<2xf32, #tpu.memory_space<smem>>
    %c1 = arith.constant 1 : index
    %12 = memref.load %arg2[%c1] : memref<2xf32, #tpu.memory_space<smem>>
    %13 = arith.select %10, %11, %12 : f32
    %c0_4 = arith.constant 0 : index
    %c0_5 = arith.constant 0 : index
    %c0_6 = arith.constant 0 : index
    %14 = vector.load %arg3[%c0_4, %c0_5, %c0_6] : memref<1x4x128xf32, #tpu.memory_space<vmem>>, vector<1x4x128xf32>
    %cst = arith.constant 0.000000e+00 : f32
    %15 = vector.broadcast %cst : f32 to vector<1x4x128xf32>
    %16 = arith.cmpf oge, %14, %15 : vector<1x4x128xf32>
    %17 = vector.broadcast %13 : f32 to vector<1x4x128xf32>
    %18 = arith.mulf %17, %14 : vector<1x4x128xf32>
    %19 = arith.select %16, %14, %18 : vector<1x4x128xi1>, vector<1x4x128xf32>
    %c0_7 = arith.constant 0 : index
    %c0_8 = arith.constant 0 : index
    %c0_9 = arith.constant 0 : index
    %20 = vector.load %arg4[%c0_7, %c0_8, %c0_9] : memref<1x4x128xf32, #tpu.memory_space<vmem>>, vector<1x4x128xf32>
    tpu.vector_store %arg4[%c0_7, %c0_8, %c0_9], %19 {strides = array<i32>} : memref<1x4x128xf32, #tpu.memory_space<vmem>>, vector<1x4x128xf32>,
    return
  }
  func.func @transform_0(%arg0: i32, %arg1: i32, %arg2: memref<2xf32, #tpu.memory_space<smem>>) -> (i32, i32, i32) {
    %c0_i32 = arith.constant 0 : i32
    %c0_i32_0 = arith.constant 0 : i32
    return %arg0, %arg1, %c0_i32 : i32, i32, i32
  }
  func.func @transform_1(%arg0: i32, %arg1: i32, %arg2: memref<2xf32, #tpu.memory_space<smem>>) -> (i32, i32, i32) {
    %c0_i32 = arith.constant 0 : i32
    %c0_i32_0 = arith.constant 0 : i32
    return %arg0, %arg1, %c0_i32 : i32, i32, i32
  }
}

</mosaic_0001>

<llo_original>
// kernel: tpu_custom_call.1
$region0: #{tpu_custom_call.1}
  #allocation0 [shape = 'u32[]', space=smem, size = 0x4, offset = 0x4, fixed_abs, tag = 'smem constant byte address 0x4 - core index']
  #allocation1 [shape = 'u32[144,128]{1,0:T(1,128)}', space=vmem, size = 0x12000, scoped, tag = 'internal scratch']
  #allocation2 [shape = 's32[1]{0}', space=sflag, size = 0x4, scoped, tag = 'scoped memory for tpu_custom_call.1']
  #allocation3 [shape = 'u8[512]{0}', space=smem, size = 0x200, scoped, tag = 'prefetched SMEM operand 0']
  %s0 = inlined_call_operand.hbm [shape: f32[2], index: 0, kind: input, shape index: {}]
  %s1 = inlined_call_operand.hbm [shape: f32[4,4,128], index: 1, kind: input, shape index: {}]
  %s2 = inlined_call_operand.hbm [shape: f32[4,4,128], index: 2, kind: output, shape index: {}]
  %s3 = sld [smem:[#allocation0]]
  $region41: #{tpu_custom_call.1} parent=0
    _
  %s5 = ssub.s32 1, %s3
  %s6 = scalar_select 0, %s5, %s3
  %8 = dma.hbm_to_smem %s0, 16, [#allocation3], [#allocation2]
  %9 = dma.done [#allocation2], 16
  %10 = sfence
  $region1: #{tpu_custom_call.1} parent=0
    #allocation4 [shape = 'u8[4096]{0}', space=vmem, size = 0x1000, scoped, tag = 'input window, operand 1']
    #allocation5 [shape = 's32[2]{0}', space=sflag, size = 0x8, scoped, tag = 'scoped memory for tpu_custom_call.1']
    #allocation6 [shape = 's32[2]{0}', space=sflag, size = 0x8, scoped, tag = 'scoped memory for tpu_custom_call.1']
    #allocation7 [shape = 'u8[4096]{0}', space=vmem, size = 0x1000, scoped, tag = 'output window, operand 0']
    %11 = vsyncpa [#allocation5], 0
    %s12 = scalar_lea.sflag [#allocation5], 1
    %13 = vsyncpa %s12, 0
    %14 = vsyncpa [#allocation6], 0
    %s15 = scalar_lea.sflag [#allocation6], 1
    %16 = vsyncpa %s15, 0
    loop: start=0, step=1, limit=6
    $region2: #{tpu_custom_call.1} parent=1 // loop_pre_header
      _
    $region3: #{tpu_custom_call.1} parent=1 // loop_header
      %s18 = sphi 0, %s22
      %p19 = scmp.ge.s32.totalorder %s18, 6
      %s25 = sphi 0, %s37
      %s26 = sphi 0, %s33
      %s27 = sphi 0, %s25
      %s28 = sphi 0, %s26
      %s29 = sphi 0, %s27
      %s30 = sphi 0, %s28
      %s42 = sphi 0, %s44
      %s45 = sphi 0, %s42
      %s46 = sphi 0, %s45
      %s62 = sphi 0, %s46
      %s70 = sphi 0, %s72
      %s73 = sphi 0, %s70
      %s74 = sphi 0, %s73
      %s90 = sphi 0, %s74
    $region4: #{tpu_custom_call.1} parent=1 // loop_header_branch
      %21 = sbr.rel (%p19) target = $region8
    $region5: #{tpu_custom_call.1} parent=1 // loop_body
      %s23 = ssub.s32 %s18, 1
      %s24 = ssub.s32 %s18, 2
      %s31 = sadd.s32 1, %s26
      %p32 = scmp.ge.s32.totalorder %s31, 1
      %s33 = scalar_select %p32, 0, %s31
      %s34 = sadd.s32 1, %s25
      %s35 = scalar_select %p32, %s34, %s25
      %p36 = scmp.ge.s32.totalorder %s35, 4
      %s37 = scalar_select %p36, 0, %s35
      %s38 = ssub.s32 %s25, %s37
      %s39 = ssub.s32 %s26, %s33
      %s40 = sor.u32 %s38, %s39
      %p41 = scmp.eq.s32.totalorder %s40, 0
      %s43 = sadd.s32 %s42, 1
      %s44 = scalar_select %p41, %s42, %s43
      %p47 = pneg %p41
      %p48 = scmp.eq.s32.totalorder %s18, 3
      %p49 = por %p47, %p48
      %p50 = scmp.ne.s32.totalorder %s42, %s45
      %p51 = scmp.eq.s32.totalorder %s18, 0
      %p52 = por %p50, %p51
      %p53 = scmp.ne.s32.totalorder %s42, %s45
      %p54 = scmp.eq.s32.totalorder %s23, 3
      %p55 = por %p53, %p54
      %p56 = scmp.ne.s32.totalorder %s45, %s46
      %p57 = scmp.eq.s32.totalorder %s23, 0
      %p58 = por %p56, %p57
      %p59 = scmp.ne.s32.totalorder %s45, %s46
      %p60 = scmp.eq.s32.totalorder %s24, 3
      %p61 = por %p59, %p60
      %p63 = scmp.ne.s32.totalorder %s46, %s62
      %p64 = scmp.eq.s32.totalorder %s24, 0
      %p65 = por %p63, %p64
      %s66 = ssub.s32 %s25, %s37
      %s67 = ssub.s32 %s26, %s33
      %s68 = sor.u32 %s66, %s67
      %p69 = scmp.eq.s32.totalorder %s68, 0
      %s71 = sadd.s32 %s70, 1
      %s72 = scalar_select %p69, %s70, %s71
      %p75 = pneg %p69
      %p76 = scmp.eq.s32.totalorder %s18, 3
      %p77 = por %p75, %p76
      %p78 = scmp.ne.s32.totalorder %s70, %s73
      %p79 = scmp.eq.s32.totalorder %s18, 0
      %p80 = por %p78, %p79
      %p81 = scmp.ne.s32.totalorder %s70, %s73
      %p82 = scmp.eq.s32.totalorder %s23, 3
      %p83 = por %p81, %p82
      %p84 = scmp.ne.s32.totalorder %s73, %s74
      %p85 = scmp.eq.s32.totalorder %s23, 0
      %p86 = por %p84, %p85
      %p87 = scmp.ne.s32.totalorder %s73, %s74
      %p88 = scmp.eq.s32.totalorder %s24, 3
      %p89 = por %p87, %p88
      %p91 = scmp.ne.s32.totalorder %s74, %s90
      %p92 = scmp.eq.s32.totalorder %s24, 0
      %p93 = por %p91, %p92
      %p94 = scmp.le.s32.totalorder 1, %s18
      %p95 = scmp.lt.s32.totalorder %s18, 5
      %p96 = pnand %p94, %p95
      %p97 = pneg %p96
      // Predicated region
      $region9: #{tpu_custom_call.1} parent=5 // pred_check
        _
      $region10: #{tpu_custom_call.1} parent=5 // pred_check_branch
        %99 = sbr.rel (%p96) target = $region12
      $region11: #{tpu_custom_call.1} parent=5 // pred_region
        %s100 = ssub.s32 %s18, 1
      $region12: #{tpu_custom_call.1} parent=5 // pred_fallthru
        _
      %p101 = scmp.lt.s32.totalorder %s18, 4
      // Predicated region
      $region13: #{tpu_custom_call.1} parent=5 // pred_check
        %p102 = pneg %p101
      $region14: #{tpu_custom_call.1} parent=5 // pred_check_branch
        %104 = sbr.rel (%p102) target = $region16
      $region15: #{tpu_custom_call.1} parent=5 // pred_region
        // Predicated region
        $region17: #{tpu_custom_call.1} parent=15 // pred_check
          %p105 = pneg %p52
        $region18: #{tpu_custom_call.1} parent=15 // pred_check_branch
          %107 = sbr.rel (%p105) target = $region20
        $region19: #{tpu_custom_call.1} parent=15 // pred_region
          %s108 = sand.u32 %s42, 1
          %s109 = scalar_lea.sflag [#allocation5], %s108
          %s110 = sand.u32 %s42, 1
          %s111 = smul.addr %s110, 4
          %s112 = scalar_lea.vmem [#allocation4], %s111
          %s114 = ssub.s32 64, 64
          %115 = vsyncadd %s109, %s114
          %s116 = sadd.s32 %s26, %s25
          %s117 = smul.addr %s116, 64
          %s118 = scalar_lea.hbm %s1, %s117
          %s120 = sshll.u32 %s112, 4
          %s121 = int_to_ptr.vmem [resolvable:$true] %s120
          %123 = dma.hbm_to_vmem [thread:$0]  %s118, 64, %s121, %s109
        $region20: #{tpu_custom_call.1} parent=15 // pred_fallthru
          _
      $region16: #{tpu_custom_call.1} parent=5 // pred_fallthru
        _
      %p124 = scmp.le.s32.totalorder 1, %s18
      %p125 = scmp.lt.s32.totalorder %s18, 5
      %p126 = pnand %p124, %p125
      %p127 = pneg %p126
      // Predicated region
      $region21: #{tpu_custom_call.1} parent=5 // pred_check
        _
      $region22: #{tpu_custom_call.1} parent=5 // pred_check_branch
        %129 = sbr.rel (%p126) target = $region24
      $region23: #{tpu_custom_call.1} parent=5 // pred_region
        %s130 = ssub.s32 %s18, 1
        %s131 = sand.u32 %s45, 1
        %s132 = scalar_lea.sflag [#allocation5], %s131
        %s133 = sand.u32 %s45, 1
        %s134 = smul.addr %s133, 4
        %s135 = scalar_lea.vmem [#allocation4], %s134
        // Predicated region
        $region25: #{tpu_custom_call.1} parent=23 // pred_check
          %p136 = pneg %p58
        $region26: #{tpu_custom_call.1} parent=23 // pred_check_branch
          %138 = sbr.rel (%p136) target = $region28
        $region27: #{tpu_custom_call.1} parent=23 // pred_region
          %139 = dma.done %s132, 64
        $region28: #{tpu_custom_call.1} parent=23 // pred_fallthru
          _
        %s140 = sand.u32 %s45, 1
        %s141 = scalar_lea.sflag [#allocation5], %s140
        %s142 = sand.u32 %s45, 1
        %s143 = smul.addr %s142, 4
        %s144 = scalar_lea.vmem [#allocation4], %s143
        %p145 = pneg %p58
        %p146 = pneg %p55
        %p147 = pneg %p86
        %p148 = pneg %p83
        %s149 = sand.u32 %s73, 1
        %s150 = scalar_lea.sflag [#allocation6], %s149
        %s151 = sand.u32 %s73, 1
        %s152 = smul.addr %s151, 4
        %s153 = scalar_lea.vmem [#allocation7], %s152
        %p154 = scmp.lt.s32.totalorder %s27, 0
        %s155 = ssub.s32 0, %s27
        %s156 = scalar_select %p154, %s155, %s27
        %s157 = sand.u32 %s156, 1
        %s158 = ssub.s32 0, %s157
        %s159 = scalar_select %p154, %s158, %s157
        %p160 = scmp.ne.s32.totalorder %s159, 0
        %p161 = scmp.lt.s32.totalorder %s159, 0
        %p162 = pnand %p161, %p160
        %p163 = pneg %p162
        %s164 = sadd.s32 %s159, 2
        %s165 = scalar_select %p163, %s164, %s159
        %p166 = scmp.eq.s32.totalorder %s165, 0
        %s167 = sld [smem:[#allocation3]]
        %s168 = sld [smem:[#allocation3 + $0x1]]
        %s169 = scalar_select %p166, %s167, %s168
        %v170 = vld [vmem:[%s135] sm:$0xf]
        %vm171 = vcmp.ge.f32.partialorder %v170, 0.0
        %v172 = vstv %s169
        %v173 = vmul.f32 %v172, %v170
        %v174 = vsel %vm171, %v170, %v173
        %175 = vst [vmem:[%s153] sm:$0xf] %v174
        %s176 = sand.u32 %s73, 1
        %s177 = scalar_lea.sflag [#allocation6], %s176
        %s178 = sand.u32 %s73, 1
        %s179 = smul.addr %s178, 4
        %s180 = scalar_lea.vmem [#allocation7], %s179
        // Predicated region
        $region29: #{tpu_custom_call.1} parent=23 // pred_check
          %p181 = pneg %p83
        $region30: #{tpu_custom_call.1} parent=23 // pred_check_branch
          %183 = sbr.rel (%p181) target = $region32
        $region31: #{tpu_custom_call.1} parent=23 // pred_region
          %s185 = ssub.s32 64, 64
          %186 = vsyncadd %s177, %s185
          %s187 = sadd.s32 %s28, %s27
          %s188 = smul.addr %s187, 64
          %s189 = scalar_lea.hbm %s2, %s188
          %s191 = sshll.u32 %s180, 4
          %s192 = int_to_ptr.vmem [resolvable:$true] %s191
          %194 = dma.vmem_to_hbm [thread:$0]  %s192, 64, %s189, %s177
        $region32: #{tpu_custom_call.1} parent=23 // pred_fallthru
          _
      $region24: #{tpu_custom_call.1} parent=5 // pred_fallthru
        _
      %p195 = scmp.le.s32.totalorder 2, %s18
      // Predicated region
      $region33: #{tpu_custom_call.1} parent=5 // pred_check
        %p196 = pneg %p195
      $region34: #{tpu_custom_call.1} parent=5 // pred_check_branch
        %198 = sbr.rel (%p196) target = $region36
      $region35: #{tpu_custom_call.1} parent=5 // pred_region
        %s199 = ssub.s32 %s18, 2
        // Predicated region
        $region37: #{tpu_custom_call.1} parent=35 // pred_check
          %p200 = pneg %p89
        $region38: #{tpu_custom_call.1} parent=35 // pred_check_branch
          %202 = sbr.rel (%p200) target = $region40
        $region39: #{tpu_custom_call.1} parent=35 // pred_region
          %s203 = sand.u32 %s74, 1
          %s204 = scalar_lea.sflag [#allocation6], %s203
          %s205 = sand.u32 %s74, 1
          %s206 = smul.addr %s205, 4
          %s207 = scalar_lea.vmem [#allocation7], %s206
          %208 = dma.done %s204, 64
        $region40: #{tpu_custom_call.1} parent=35 // pred_fallthru
          _
      $region36: #{tpu_custom_call.1} parent=5 // pred_fallthru
        _
    $region6: #{tpu_custom_call.1} parent=1 // loop_footer
      %s22 = sadd.s32 1, %s18
    $region7: #{tpu_custom_call.1} parent=1 // loop_footer_branch
      %17 = sbr.rel target = $region3
    $region8: #{tpu_custom_call.1} parent=1 // loop_exit
      _
    %209 = vsyncpa [#allocation5], 1
    %s210 = scalar_lea.sflag [#allocation5], 1
    %211 = vsyncpa %s210, 1
    %212 = vsyncpa [#allocation6], 1
    %s213 = scalar_lea.sflag [#allocation6], 1
    %214 = vsyncpa %s213, 1

</llo_original>
